<compile_context>
chip_gen: v6e
topology: v6e:2x2x1
jax: 0.10.0
libtpu: 0.0.40
codegen_flags: <defaults>
</compile_context>

<pallas_src>
import functools
import math

import jax
import jax.numpy as jnp
from jax import lax
from jax.experimental import pallas as pl
from jax.experimental.pallas import tpu as pltpu

_LANE = 128


def _round_up(x, m):
    return ((x + m - 1) // m) * m


def _sublane_rows(dtype):
    # Rows per packed sublane tile: 8 for 32-bit, 16 for 16-bit, 32 for 8-bit.
    return max(8, 32 // jnp.dtype(dtype).itemsize)


def _default_vmem_budget():
    """Generation-aware VMEM budget with headroom for Mosaic internal scratch."""
    try:
        cap = int(pltpu.get_tpu_info().vmem_capacity_bytes)
    except Exception:
        return 48 * 1024 * 1024          # conservative fallback, fits every gen
    frac = 0.80 if cap >= 128 * 1024 * 1024 else 0.65   # v5e/v6e vs v7x (64 MiB/TC)
    return int(cap * frac)


# ------------------------------ kernel body ------------------------------- #

def _autoencoder_kernel(x_ref, w1_ref, b1_ref, w2_ref, b2_ref, w3_ref, b3_ref,
                        o_ref, *, mxu_dtype, precision):
    """One (TM, dp) row tile: three fused matmuls + bias adds + tanh."""
    # x and the weights arrive already padded & pre-cast to the MXU input
    # dtype; only the per-tile f32 intermediates are cast here.
    h1 = jnp.dot(x_ref[...], w1_ref[...],
                 preferred_element_type=jnp.float32,
                 precision=precision) + b1_ref[...]
    h2 = jnp.tanh(
        jnp.dot(h1.astype(mxu_dtype), w2_ref[...],
                preferred_element_type=jnp.float32,
                precision=precision) + b2_ref[...])
    y = jnp.dot(h2.astype(mxu_dtype), w3_ref[...],
                preferred_element_type=jnp.float32,
                precision=precision) + b3_ref[...]
    o_ref[...] = y.astype(o_ref.dtype)


# ------------------------------ host wrappers ------------------------------ #

def init_params(key, dim, decoder_dim, inner_dim, dtype=jnp.float32):
    """nn.Linear-style init. Weights stored as (in, out) == PyTorch weight.T."""
    ks = jax.random.split(key, 6)

    def linear(kw, kb, fan_in, fan_out):
        bound = 1.0 / math.sqrt(fan_in)
        w = jax.random.uniform(kw, (fan_in, fan_out), dtype, -bound, bound)
        b = jax.random.uniform(kb, (1, fan_out), dtype, -bound, bound)
        return w, b

    w1, b1 = linear(ks[0], ks[1], dim, inner_dim)
    w2, b2 = linear(ks[2], ks[3], inner_dim, decoder_dim)
    w3, b3 = linear(ks[4], ks[5], decoder_dim, dim)
    return {"w1": w1, "b1": b1, "w2": w2, "b2": b2, "w3": w3, "b3": b3}


def prepare_params(params, *, mxu_dtype=jnp.bfloat16):
    """One-time: pad every feature dim to a lane multiple (128) and cast the
    weights to the MXU input dtype.  Zero padding does not change the math."""
    w1, b1 = params["w1"], params["b1"]
    w2, b2 = params["w2"], params["b2"]
    w3, b3 = params["w3"], params["b3"]
    dim, inner = w1.shape
    dec = w2.shape[1]
    out_dim = w3.shape[1]

    dp, ip, cp, op = (_round_up(d, _LANE) for d in (dim, inner, dec, out_dim))

    def pad_w(w, r, c):
        return jnp.pad(w, ((0, r - w.shape[0]), (0, c - w.shape[1]))).astype(mxu_dtype)

    def pad_b(bias, c):
        return jnp.pad(bias.astype(jnp.float32), ((0, 0), (0, c - bias.shape[1])))

    padded = {
        "w1": pad_w(w1, dp, ip), "b1": pad_b(b1, ip),
        "w2": pad_w(w2, ip, cp), "b2": pad_b(b2, cp),
        "w3": pad_w(w3, cp, op), "b3": pad_b(b3, op),
    }
    meta = dict(dim=dim, inner=inner, dec=dec, out_dim=out_dim,
                dp=dp, ip=ip, cp=cp, op=op, mxu_dtype=jnp.dtype(mxu_dtype))
    return padded, meta


def autoencoder_forward(x, padded_params, meta, *, tm_max=1024,
                        vmem_budget_bytes=None):
    """x: (B, T, dim). padded_params/meta from prepare_params()."""
    b, t, dim = x.shape
    assert dim == meta["dim"], (dim, meta["dim"])
    m = b * t
    out_dtype = x.dtype
    mxu_dtype = meta["mxu_dtype"]
    dp, ip, cp, op = meta["dp"], meta["ip"], meta["cp"], meta["op"]
    out_dim = meta["out_dim"]

    if vmem_budget_bytes is None:
        vmem_budget_bytes = _default_vmem_budget()

    w1p, b1p = padded_params["w1"], padded_params["b1"]
    w2p, b2p = padded_params["w2"], padded_params["b2"]
    w3p, b3p = padded_params["w3"], padded_params["b3"]

    mxu_bytes = jnp.dtype(mxu_dtype).itemsize
    out_bytes = jnp.dtype(out_dtype).itemsize
    weight_bytes = (w1p.size + w2p.size + w3p.size) * mxu_bytes
    bias_bytes = 8 * (ip + cp + op) * 4      # (1, N) f32 blocks pad sublane -> 8

    def vmem_estimate(tm_):
        est = 2 * tm_ * dp * mxu_bytes                 # x tiles, double-buffered
        est += 2 * tm_ * op * out_bytes                # out tiles, double-buffered
        est += 2 * (weight_bytes + bias_bytes)         # resident weights (worst-case 2 bufs)
        est += tm_ * (ip + cp + op) * 4                # f32 h1/h2/y intermediates
        est += tm_ * (ip + cp) * mxu_bytes             # h1/h2 MXU-input casts
        return est

    compute_budget = int(vmem_budget_bytes * 0.9)      # headroom for compiler scratch

    sublane = math.lcm(_sublane_rows(mxu_dtype), _sublane_rows(out_dtype))
    if vmem_estimate(sublane) > compute_budget:
        # TODO(synk): add a second ("arbitrary") grid axis tiling the inner /
        # decoder dims with a VMEM accumulator when the weights themselves do
        # not fit in VMEM (not needed at these model sizes).
        raise ValueError(
            f"AutoEncoder weights ({weight_bytes / 2**20:.1f} MiB resident) do "
            f"not fit the VMEM budget ({vmem_budget_bytes / 2**20:.1f} MiB); "
            "a feature-dim-tiled variant is required.")

    # Balanced row tiles: minimal M padding, aligned to the packed sublane tile.
    num_tiles = max(1, pl.cdiv(m, tm_max))
    tm = _round_up(pl.cdiv(m, num_tiles), sublane)
    while vmem_estimate(tm) > compute_budget:
        num_tiles += 1
        tm = _round_up(pl.cdiv(m, num_tiles), sublane)
    mp = num_tiles * tm
    grid = (num_tiles,)

    x_flat = x.reshape(m, dim)
    xp = jnp.pad(x_flat, ((0, mp - m), (0, dp - dim))).astype(mxu_dtype)

    # bf16 inputs: default precision. f32 inputs: explicit HIGHEST so the dot
    # is not silently demoted to a low-precision bf16 pass.
    precision = (lax.Precision.HIGHEST
                 if mxu_dtype == jnp.dtype(jnp.float32) else None)

    flops = 2 * mp * (dp * ip + ip * cp + cp * op)
    bytes_accessed = (xp.size * mxu_bytes + mp * op * out_bytes +
                      weight_bytes + (b1p.size + b2p.size + b3p.size) * 4)
    cost = pl.CostEstimate(flops=flops, transcendentals=mp * cp,
                           bytes_accessed=bytes_accessed)

    kernel = functools.partial(_autoencoder_kernel, mxu_dtype=mxu_dtype,
                               precision=precision)

    def call(single_buffer_weights):
        def resident(arr):
            # Whole-array block, same block index every step -> stays in VMEM.
            kwargs = {}
            if single_buffer_weights:
                kwargs["pipeline_mode"] = pl.Buffered(1)
            return pl.BlockSpec(arr.shape, lambda i: (0, 0), **kwargs)

        return pl.pallas_call(
            kernel,
            out_shape=jax.ShapeDtypeStruct((mp, op), out_dtype),
            grid_spec=pltpu.PrefetchScalarGridSpec(
                num_scalar_prefetch=0,
                grid=grid,
                in_specs=[
                    pl.BlockSpec((tm, dp), lambda i: (i, 0)),  # pipelined x tile
                    resident(w1p), resident(b1p),
                    resident(w2p), resident(b2p),
                    resident(w3p), resident(b3p),
                ],
                out_specs=pl.BlockSpec((tm, op), lambda i: (i, 0)),
            ),
            compiler_params=pltpu.CompilerParams(
                dimension_semantics=("parallel",),  # shard row tiles across TCs
                vmem_limit_bytes=int(vmem_budget_bytes),
            ),
            cost_estimate=cost,
        )(xp, w1p, b1p, w2p, b2p, w3p, b3p)

    try:
        out = call(single_buffer_weights=True)
    except Exception:
        # Older / stricter builds may reject Buffered(1); default buffering is
        # functionally identical (just uses 2x resident-weight VMEM).
        out = call(single_buffer_weights=False)

    return out[:m, :out_dim].reshape(b, t, out_dim)


def reference_forward(x, params, precision=lax.Precision.HIGHEST):
    b, t, dim = x.shape
    xf = x.reshape(b * t, dim)
    h1 = jnp.dot(xf, params["w1"], precision=precision) + params["b1"]
    h2 = jnp.tanh(jnp.dot(h1, params["w2"], precision=precision) + params["b2"])
    y = jnp.dot(h2, params["w3"], precision=precision) + params["b3"]
    return y.reshape(b, t, -1)


if __name__ == "__main__":
    # Small shapes consistent with the module's (batch, seq, dim) forward.
    batch, seq = 2, 8
    dim, decoder_dim, inner_dim = 32, 48, 64

    key = jax.random.PRNGKey(0)
    k_x, k_p = jax.random.split(key)

    x = jax.random.normal(k_x, (batch, seq, dim), dtype=jnp.float32)
    params = init_params(k_p, dim, decoder_dim, inner_dim)

    y_ref = reference_forward(x, params)

    # Default: bf16 MXU inputs, f32 accumulation / bias / tanh (v5e, v6e, v7x).
    padded_bf16, meta_bf16 = prepare_params(params, mxu_dtype=jnp.bfloat16)
    y_bf16 = jax.block_until_ready(autoencoder_forward(x, padded_bf16, meta_bf16))
    assert y_bf16.shape == (batch, seq, dim), y_bf16.shape
    assert jnp.allclose(y_bf16, y_ref, atol=5e-2, rtol=5e-2), "bf16 mismatch vs reference"

    # Tight-numerics path: f32 MXU inputs with explicit HIGHEST precision.
    padded_f32, meta_f32 = prepare_params(params, mxu_dtype=jnp.float32)
    y_f32 = jax.block_until_ready(autoencoder_forward(x, padded_f32, meta_f32))
    assert jnp.allclose(y_f32, y_ref, atol=1e-4, rtol=1e-4), "f32 mismatch vs reference"

    print("KERNEL_OK")
</pallas_src>

<mosaic_0001>
module attributes {stable_mosaic.version = 11 : i64} {
  func.func @_autoencoder_kernel(%arg0: i32, %arg1: memref<16x128xbf16, #tpu.memory_space<vmem>>, %arg2: memref<128x128xbf16, #tpu.memory_space<vmem>>, %arg3: memref<1x128xf32, #tpu.memory_space<vmem>>, %arg4: memref<128x128xbf16, #tpu.memory_space<vmem>>, %arg5: memref<1x128xf32, #tpu.memory_space<vmem>>, %arg6: memref<128x128xbf16, #tpu.memory_space<vmem>>, %arg7: memref<1x128xf32, #tpu.memory_space<vmem>>, %arg8: memref<16x128xf32, #tpu.memory_space<vmem>>) attributes {dimension_semantics = [#tpu.dimension_semantics<parallel>], iteration_bounds = array<i64: 1>, scalar_prefetch = 0 : i64, scratch_operands = 0 : i64, tpu.core_type = #tpu.core_type<tc>, window_params = [{transform_indices = @transform_0, window_bounds = array<i64: 16, 128>}, {pipeline_mode = #tpu.pipeline_mode<synchronous>, transform_indices = @transform_1, window_bounds = array<i64: 128, 128>}, {pipeline_mode = #tpu.pipeline_mode<synchronous>, transform_indices = @transform_2, window_bounds = array<i64: 1, 128>}, {pipeline_mode = #tpu.pipeline_mode<synchronous>, transform_indices = @transform_3, window_bounds = array<i64: 128, 128>}, {pipeline_mode = #tpu.pipeline_mode<synchronous>, transform_indices = @transform_4, window_bounds = array<i64: 1, 128>}, {pipeline_mode = #tpu.pipeline_mode<synchronous>, transform_indices = @transform_5, window_bounds = array<i64: 128, 128>}, {pipeline_mode = #tpu.pipeline_mode<synchronous>, transform_indices = @transform_6, window_bounds = array<i64: 1, 128>}, {transform_indices = @transform_7, window_bounds = array<i64: 16, 128>}]} {
    %c0 = arith.constant 0 : index
    %c0_0 = arith.constant 0 : index
    %0 = vector.load %arg1[%c0, %c0_0] : memref<16x128xbf16, #tpu.memory_space<vmem>>, vector<16x128xbf16>
    %c0_1 = arith.constant 0 : index
    %c0_2 = arith.constant 0 : index
    %1 = vector.load %arg2[%c0_1, %c0_2] : memref<128x128xbf16, #tpu.memory_space<vmem>>, vector<128x128xbf16>
    %cst = arith.constant dense<0.000000e+00> : vector<16x128xf32>
    %2 = tpu.matmul %0, %1, %cst {dimension_numbers = #tpu.dot_dimension_numbers<[1], [0], [0], [1], [0, 0, 1, 1], [], []>} : vector<16x128xbf16>, vector<128x128xbf16>, vector<16x128xf32> -> vector<16x128xf32>
    %c0_3 = arith.constant 0 : index
    %c0_4 = arith.constant 0 : index
    %3 = vector.load %arg3[%c0_3, %c0_4] : memref<1x128xf32, #tpu.memory_space<vmem>>, vector<1x128xf32>
    %4 = vector.broadcast %3 : vector<1x128xf32> to vector<16x128xf32>
    %5 = arith.addf %2, %4 : vector<16x128xf32>
    %6 = arith.truncf %5 : vector<16x128xf32> to vector<16x128xbf16>
    %c0_5 = arith.constant 0 : index
    %c0_6 = arith.constant 0 : index
    %7 = vector.load %arg4[%c0_5, %c0_6] : memref<128x128xbf16, #tpu.memory_space<vmem>>, vector<128x128xbf16>
    %cst_7 = arith.constant dense<0.000000e+00> : vector<16x128xf32>
    %8 = tpu.matmul %6, %7, %cst_7 {dimension_numbers = #tpu.dot_dimension_numbers<[1], [0], [0], [1], [0, 0, 1, 1], [], []>} : vector<16x128xbf16>, vector<128x128xbf16>, vector<16x128xf32> -> vector<16x128xf32>
    %c0_8 = arith.constant 0 : index
    %c0_9 = arith.constant 0 : index
    %9 = vector.load %arg5[%c0_8, %c0_9] : memref<1x128xf32, #tpu.memory_space<vmem>>, vector<1x128xf32>
    %10 = vector.broadcast %9 : vector<1x128xf32> to vector<16x128xf32>
    %11 = arith.addf %8, %10 : vector<16x128xf32>
    %12 = math.tanh %11 : vector<16x128xf32>
    %13 = arith.truncf %12 : vector<16x128xf32> to vector<16x128xbf16>
    %c0_10 = arith.constant 0 : index
    %c0_11 = arith.constant 0 : index
    %14 = vector.load %arg6[%c0_10, %c0_11] : memref<128x128xbf16, #tpu.memory_space<vmem>>, vector<128x128xbf16>
    %cst_12 = arith.constant dense<0.000000e+00> : vector<16x128xf32>
    %15 = tpu.matmul %13, %14, %cst_12 {dimension_numbers = #tpu.dot_dimension_numbers<[1], [0], [0], [1], [0, 0, 1, 1], [], []>} : vector<16x128xbf16>, vector<128x128xbf16>, vector<16x128xf32> -> vector<16x128xf32>
    %c0_13 = arith.constant 0 : index
    %c0_14 = arith.constant 0 : index
    %16 = vector.load %arg7[%c0_13, %c0_14] : memref<1x128xf32, #tpu.memory_space<vmem>>, vector<1x128xf32>
    %17 = vector.broadcast %16 : vector<1x128xf32> to vector<16x128xf32>
    %18 = arith.addf %15, %17 : vector<16x128xf32>
    %c0_15 = arith.constant 0 : index
    %c0_16 = arith.constant 0 : index
    %19 = vector.load %arg8[%c0_15, %c0_16] : memref<16x128xf32, #tpu.memory_space<vmem>>, vector<16x128xf32>
    tpu.vector_store %arg8[%c0_15, %c0_16], %18 {strides = array<i32>} : memref<16x128xf32, #tpu.memory_space<vmem>>, vector<16x128xf32>,
    return
  }
  func.func @transform_0(%arg0: i32) -> (i32, i32) {
    %c0_i32 = arith.constant 0 : i32
    %c0_i32_0 = arith.constant 0 : i32
    return %arg0, %c0_i32 : i32, i32
  }
  func.func @transform_1(%arg0: i32) -> (i32, i32) {
    %c0_i32 = arith.constant 0 : i32
    %c0_i32_0 = arith.constant 0 : i32
    %c0_i32_1 = arith.constant 0 : i32
    return %c0_i32, %c0_i32_0 : i32, i32
  }
  func.func @transform_2(%arg0: i32) -> (i32, i32) {
    %c0_i32 = arith.constant 0 : i32
    %c0_i32_0 = arith.constant 0 : i32
    %c0_i32_1 = arith.constant 0 : i32
    return %c0_i32, %c0_i32_0 : i32, i32
  }
  func.func @transform_3(%arg0: i32) -> (i32, i32) {
    %c0_i32 = arith.constant 0 : i32
    %c0_i32_0 = arith.constant 0 : i32
    %c0_i32_1 = arith.constant 0 : i32
    return %c0_i32, %c0_i32_0 : i32, i32
  }
  func.func @transform_4(%arg0: i32) -> (i32, i32) {
    %c0_i32 = arith.constant 0 : i32
    %c0_i32_0 = arith.constant 0 : i32
    %c0_i32_1 = arith.constant 0 : i32
    return %c0_i32, %c0_i32_0 : i32, i32
  }
  func.func @transform_5(%arg0: i32) -> (i32, i32) {
    %c0_i32 = arith.constant 0 : i32
    %c0_i32_0 = arith.constant 0 : i32
    %c0_i32_1 = arith.constant 0 : i32
    return %c0_i32, %c0_i32_0 : i32, i32
  }
  func.func @transform_6(%arg0: i32) -> (i32, i32) {
    %c0_i32 = arith.constant 0 : i32
    %c0_i32_0 = arith.constant 0 : i32
    %c0_i32_1 = arith.constant 0 : i32
    return %c0_i32, %c0_i32_0 : i32, i32
  }
  func.func @transform_7(%arg0: i32) -> (i32, i32) {
    %c0_i32 = arith.constant 0 : i32
    %c0_i32_0 = arith.constant 0 : i32
    return %arg0, %c0_i32 : i32, i32
  }
}

module attributes {stable_mosaic.version = 11 : i64} {
  func.func @_autoencoder_kernel(%arg0: i32, %arg1: memref<16x128xbf16, #tpu.memory_space<vmem>>, %arg2: memref<128x128xbf16, #tpu.memory_space<vmem>>, %arg3: memref<1x128xf32, #tpu.memory_space<vmem>>, %arg4: memref<128x128xbf16, #tpu.memory_space<vmem>>, %arg5: memref<1x128xf32, #tpu.memory_space<vmem>>, %arg6: memref<128x128xbf16, #tpu.memory_space<vmem>>, %arg7: memref<1x128xf32, #tpu.memory_space<vmem>>, %arg8: memref<16x128xf32, #tpu.memory_space<vmem>>) attributes {dimension_semantics = [#tpu.dimension_semantics<parallel>], iteration_bounds = array<i64: 1>, scalar_prefetch = 0 : i64, scratch_operands = 0 : i64, tpu.core_type = #tpu.core_type<tc>, window_params = [{transform_indices = @transform_0, window_bounds = array<i64: 16, 128>}, {pipeline_mode = #tpu.pipeline_mode<synchronous>, transform_indices = @transform_1, window_bounds = array<i64: 128, 128>}, {pipeline_mode = #tpu.pipeline_mode<synchronous>, transform_indices = @transform_2, window_bounds = array<i64: 1, 128>}, {pipeline_mode = #tpu.pipeline_mode<synchronous>, transform_indices = @transform_3, window_bounds = array<i64: 128, 128>}, {pipeline_mode = #tpu.pipeline_mode<synchronous>, transform_indices = @transform_4, window_bounds = array<i64: 1, 128>}, {pipeline_mode = #tpu.pipeline_mode<synchronous>, transform_indices = @transform_5, window_bounds = array<i64: 128, 128>}, {pipeline_mode = #tpu.pipeline_mode<synchronous>, transform_indices = @transform_6, window_bounds = array<i64: 1, 128>}, {transform_indices = @transform_7, window_bounds = array<i64: 16, 128>}]} {
    %c0 = arith.constant 0 : index
    %c0_0 = arith.constant 0 : index
    %0 = vector.load %arg1[%c0, %c0_0] : memref<16x128xbf16, #tpu.memory_space<vmem>>, vector<16x128xbf16>
    %c0_1 = arith.constant 0 : index
    %c0_2 = arith.constant 0 : index
    %1 = vector.load %arg2[%c0_1, %c0_2] : memref<128x128xbf16, #tpu.memory_space<vmem>>, vector<128x128xbf16>
    %cst = arith.constant dense<0.000000e+00> : vector<16x128xf32>
    %2 = tpu.matmul %0, %1, %cst {dimension_numbers = #tpu.dot_dimension_numbers<[1], [0], [0], [1], [0, 0, 1, 1], [], []>} : vector<16x128xbf16>, vector<128x128xbf16>, vector<16x128xf32> -> vector<16x128xf32>
    %c0_3 = arith.constant 0 : index
    %c0_4 = arith.constant 0 : index
    %3 = vector.load %arg3[%c0_3, %c0_4] : memref<1x128xf32, #tpu.memory_space<vmem>>, vector<1x128xf32>
    %4 = vector.broadcast %3 : vector<1x128xf32> to vector<16x128xf32>
    %5 = arith.addf %2, %4 : vector<16x128xf32>
    %6 = arith.truncf %5 : vector<16x128xf32> to vector<16x128xbf16>
    %c0_5 = arith.constant 0 : index
    %c0_6 = arith.constant 0 : index
    %7 = vector.load %arg4[%c0_5, %c0_6] : memref<128x128xbf16, #tpu.memory_space<vmem>>, vector<128x128xbf16>
    %cst_7 = arith.constant dense<0.000000e+00> : vector<16x128xf32>
    %8 = tpu.matmul %6, %7, %cst_7 {dimension_numbers = #tpu.dot_dimension_numbers<[1], [0], [0], [1], [0, 0, 1, 1], [], []>} : vector<16x128xbf16>, vector<128x128xbf16>, vector<16x128xf32> -> vector<16x128xf32>
    %c0_8 = arith.constant 0 : index
    %c0_9 = arith.constant 0 : index
    %9 = vector.load %arg5[%c0_8, %c0_9] : memref<1x128xf32, #tpu.memory_space<vmem>>, vector<1x128xf32>
    %10 = vector.broadcast %9 : vector<1x128xf32> to vector<16x128xf32>
    %11 = arith.addf %8, %10 : vector<16x128xf32>
    %12 = math.tanh %11 : vector<16x128xf32>
    %13 = arith.truncf %12 : vector<16x128xf32> to vector<16x128xbf16>
    %c0_10 = arith.constant 0 : index
    %c0_11 = arith.constant 0 : index
    %14 = vector.load %arg6[%c0_10, %c0_11] : memref<128x128xbf16, #tpu.memory_space<vmem>>, vector<128x128xbf16>
    %cst_12 = arith.constant dense<0.000000e+00> : vector<16x128xf32>
    %15 = tpu.matmul %13, %14, %cst_12 {dimension_numbers = #tpu.dot_dimension_numbers<[1], [0], [0], [1], [0, 0, 1, 1], [], []>} : vector<16x128xbf16>, vector<128x128xbf16>, vector<16x128xf32> -> vector<16x128xf32>
    %c0_13 = arith.constant 0 : index
    %c0_14 = arith.constant 0 : index
    %16 = vector.load %arg7[%c0_13, %c0_14] : memref<1x128xf32, #tpu.memory_space<vmem>>, vector<1x128xf32>
    %17 = vector.broadcast %16 : vector<1x128xf32> to vector<16x128xf32>
    %18 = arith.addf %15, %17 : vector<16x128xf32>
    %c0_15 = arith.constant 0 : index
    %c0_16 = arith.constant 0 : index
    %19 = vector.load %arg8[%c0_15, %c0_16] : memref<16x128xf32, #tpu.memory_space<vmem>>, vector<16x128xf32>
    tpu.vector_store %arg8[%c0_15, %c0_16], %18 {strides = array<i32>} : memref<16x128xf32, #tpu.memory_space<vmem>>, vector<16x128xf32>,
    return
  }
  func.func @transform_0(%arg0: i32) -> (i32, i32) {
    %c0_i32 = arith.constant 0 : i32
    %c0_i32_0 = arith.constant 0 : i32
    return %arg0, %c0_i32 : i32, i32
  }
  func.func @transform_1(%arg0: i32) -> (i32, i32) {
    %c0_i32 = arith.constant 0 : i32
    %c0_i32_0 = arith.constant 0 : i32
    %c0_i32_1 = arith.constant 0 : i32
    return %c0_i32, %c0_i32_0 : i32, i32
  }
  func.func @transform_2(%arg0: i32) -> (i32, i32) {
    %c0_i32 = arith.constant 0 : i32
    %c0_i32_0 = arith.constant 0 : i32
    %c0_i32_1 = arith.constant 0 : i32
    return %c0_i32, %c0_i32_0 : i32, i32
  }
  func.func @transform_3(%arg0: i32) -> (i32, i32) {
    %c0_i32 = arith.constant 0 : i32
    %c0_i32_0 = arith.constant 0 : i32
    %c0_i32_1 = arith.constant 0 : i32
    return %c0_i32, %c0_i32_0 : i32, i32
  }
  func.func @transform_4(%arg0: i32) -> (i32, i32) {
    %c0_i32 = arith.constant 0 : i32
    %c0_i32_0 = arith.constant 0 : i32
    %c0_i32_1 = arith.constant 0 : i32
    return %c0_i32, %c0_i32_0 : i32, i32
  }
  func.func @transform_5(%arg0: i32) -> (i32, i32) {
    %c0_i32 = arith.constant 0 : i32
    %c0_i32_0 = arith.constant 0 : i32
    %c0_i32_1 = arith.constant 0 : i32
    return %c0_i32, %c0_i32_0 : i32, i32
  }
  func.func @transform_6(%arg0: i32) -> (i32, i32) {
    %c0_i32 = arith.constant 0 : i32
    %c0_i32_0 = arith.constant 0 : i32
    %c0_i32_1 = arith.constant 0 : i32
    return %c0_i32, %c0_i32_0 : i32, i32
  }
  func.func @transform_7(%arg0: i32) -> (i32, i32) {
    %c0_i32 = arith.constant 0 : i32
    %c0_i32_0 = arith.constant 0 : i32
    return %arg0, %c0_i32 : i32, i32
  }
}

</mosaic_0001>

<llo_original>
// kernel: tpu_custom_call.1
$region0: #{tpu_custom_call.1}
  #allocation0 [shape = 'u32[]', space=smem, size = 0x4, offset = 0x4, fixed_abs, tag = 'smem constant byte address 0x4 - core index']
  #allocation1 [shape = 'u32[144,128]{1,0:T(1,128)}', space=vmem, size = 0x12000, scoped, tag = 'internal scratch']
  %s0 = inlined_call_operand.hbm [shape: bf16[16,128], index: 0, kind: input, shape index: {}]
  %s1 = inlined_call_operand.hbm [shape: bf16[128,128], index: 1, kind: input, shape index: {}]
  %s2 = inlined_call_operand.vmem [shape: f32[1,128], index: 2, kind: input, shape index: {}]
  %s3 = inlined_call_operand.hbm [shape: bf16[128,128], index: 3, kind: input, shape index: {}]
  %s4 = inlined_call_operand.vmem [shape: f32[1,128], index: 4, kind: input, shape index: {}]
  %s5 = inlined_call_operand.hbm [shape: bf16[128,128], index: 5, kind: input, shape index: {}]
  %s6 = inlined_call_operand.vmem [shape: f32[1,128], index: 6, kind: input, shape index: {}]
  %s7 = inlined_call_operand.hbm [shape: f32[16,128], index: 7, kind: output, shape index: {}]
  %s8 = sld [smem:[#allocation0]]
  $region54: #{tpu_custom_call.1} parent=0
    _
  %s10 = ssub.s32 1, %s8
  %s11 = scalar_select 0, %s10, %s8
  $region1: #{tpu_custom_call.1} parent=0
    #allocation2 [shape = 'u8[4096]{0}', space=vmem, size = 0x1000, scoped, tag = 'input window, operand 0, single buffered']
    #allocation3 [shape = 's32[1]{0}', space=sflag, size = 0x4, scoped, tag = 'scoped memory for tpu_custom_call.1']
    #allocation4 [shape = 's32[1]{0}', space=sflag, size = 0x4, scoped, tag = 'scoped memory for tpu_custom_call.1']
    #allocation5 [shape = 'u8[32768]{0}', space=vmem, size = 0x8000, scoped, tag = 'input window, operand 1, single buffered']
    #allocation6 [shape = 's32[1]{0}', space=sflag, size = 0x4, scoped, tag = 'scoped memory for tpu_custom_call.1']
    #allocation7 [shape = 'u8[32768]{0}', space=vmem, size = 0x8000, scoped, tag = 'input window, operand 3, single buffered']
    #allocation8 [shape = 'u8[32768]{0}', space=vmem, size = 0x8000, scoped, tag = 'input window, operand 5, single buffered']
    #allocation9 [shape = 's32[1]{0}', space=sflag, size = 0x4, scoped, tag = 'scoped memory for tpu_custom_call.1']
    #allocation10 [shape = 'u8[8192]{0}', space=vmem, size = 0x2000, scoped, tag = 'output window, operand 0, single buffered']
    %12 = vsyncpa [#allocation3], 0
    %13 = vsyncpa [#allocation6], 0
    %14 = vsyncpa [#allocation9], 0
    %15 = vsyncpa [#allocation4], 0
    // Predicated region
    $region2: #{tpu_custom_call.1} parent=1 // pred_check
      _
    $region3: #{tpu_custom_call.1} parent=1 // pred_check_branch
      %17 = sbr.rel (0) target = $region5
    $region4: #{tpu_custom_call.1} parent=1 // pred_region
      %s19 = ssub.s32 128, 128
      %20 = vsyncadd [#allocation3], %s19
      %s21 = sshll.u32 [#allocation2], 4
      %s22 = int_to_ptr.vmem [resolvable:$true] %s21
      %27 = dma.hbm_to_vmem [thread:$0]  %s0, 128, %s22, [#allocation3], 64, 64, 4
    $region5: #{tpu_custom_call.1} parent=1 // pred_fallthru
      _
    // Predicated region
    $region6: #{tpu_custom_call.1} parent=1 // pred_check
      _
    $region7: #{tpu_custom_call.1} parent=1 // pred_check_branch
      %29 = sbr.rel (0) target = $region9
    $region8: #{tpu_custom_call.1} parent=1 // pred_region
      %s31 = ssub.s32 1024, 1024
      %32 = vsyncadd [#allocation6], %s31
      %s33 = sshll.u32 [#allocation5], 4
      %s34 = int_to_ptr.vmem [resolvable:$true] %s33
      %39 = dma.hbm_to_vmem [thread:$0]  %s1, 1024, %s34, [#allocation6], 64, 64, 4
    $region9: #{tpu_custom_call.1} parent=1 // pred_fallthru
      _
    // Predicated region
    $region10: #{tpu_custom_call.1} parent=1 // pred_check
      _
    $region11: #{tpu_custom_call.1} parent=1 // pred_check_branch
      %41 = sbr.rel (0) target = $region13
    $region12: #{tpu_custom_call.1} parent=1 // pred_region
      _
    $region13: #{tpu_custom_call.1} parent=1 // pred_fallthru
      _
    // Predicated region
    $region14: #{tpu_custom_call.1} parent=1 // pred_check
      _
    $region15: #{tpu_custom_call.1} parent=1 // pred_check_branch
      %43 = sbr.rel (0) target = $region17
    $region16: #{tpu_custom_call.1} parent=1 // pred_region
      %s45 = ssub.s32 1024, 1024
      %46 = vsyncadd [#allocation6], %s45
      %s47 = sshll.u32 [#allocation7], 4
      %s48 = int_to_ptr.vmem [resolvable:$true] %s47
      %53 = dma.hbm_to_vmem [thread:$0]  %s3, 1024, %s48, [#allocation6], 64, 64, 4
    $region17: #{tpu_custom_call.1} parent=1 // pred_fallthru
      _
    // Predicated region
    $region18: #{tpu_custom_call.1} parent=1 // pred_check
      _
    $region19: #{tpu_custom_call.1} parent=1 // pred_check_branch
      %55 = sbr.rel (0) target = $region21
    $region20: #{tpu_custom_call.1} parent=1 // pred_region
      _
    $region21: #{tpu_custom_call.1} parent=1 // pred_fallthru
      _
    // Predicated region
    $region22: #{tpu_custom_call.1} parent=1 // pred_check
      _
    $region23: #{tpu_custom_call.1} parent=1 // pred_check_branch
      %57 = sbr.rel (0) target = $region25
    $region24: #{tpu_custom_call.1} parent=1 // pred_region
      %s59 = ssub.s32 1024, 1024
      %60 = vsyncadd [#allocation9], %s59
      %s61 = sshll.u32 [#allocation8], 4
      %s62 = int_to_ptr.vmem [resolvable:$true] %s61
      %67 = dma.hbm_to_vmem [thread:$0]  %s5, 1024, %s62, [#allocation9], 64, 64, 4
    $region25: #{tpu_custom_call.1} parent=1 // pred_fallthru
      _
    // Predicated region
    $region26: #{tpu_custom_call.1} parent=1 // pred_check
      _
    $region27: #{tpu_custom_call.1} parent=1 // pred_check_branch
      %69 = sbr.rel (0) target = $region29
    $region28: #{tpu_custom_call.1} parent=1 // pred_region
      _
    $region29: #{tpu_custom_call.1} parent=1 // pred_fallthru
      _
    // Predicated region
    $region30: #{tpu_custom_call.1} parent=1 // pred_check
      _
    $region31: #{tpu_custom_call.1} parent=1 // pred_check_branch
      %71 = sbr.rel (0) target = $region33
    $region32: #{tpu_custom_call.1} parent=1 // pred_region
      %72 = dma.done [#allocation3], 128
    $region33: #{tpu_custom_call.1} parent=1 // pred_fallthru
      _
    // Predicated region
    $region34: #{tpu_custom_call.1} parent=1 // pred_check
      _
    $region35: #{tpu_custom_call.1} parent=1 // pred_check_branch
      %74 = sbr.rel (0) target = $region37
    $region36: #{tpu_custom_call.1} parent=1 // pred_region
      %75 = dma.done [#allocation6], 1024
    $region37: #{tpu_custom_call.1} parent=1 // pred_fallthru
      _
    // Predicated region
    $region38: #{tpu_custom_call.1} parent=1 // pred_check
      _
    $region39: #{tpu_custom_call.1} parent=1 // pred_check_branch
      %77 = sbr.rel (0) target = $region41
    $region40: #{tpu_custom_call.1} parent=1 // pred_region
      %78 = dma.done [#allocation6], 1024
    $region41: #{tpu_custom_call.1} parent=1 // pred_fallthru
      _
    // Predicated region
    $region42: #{tpu_custom_call.1} parent=1 // pred_check
      _
    $region43: #{tpu_custom_call.1} parent=1 // pred_check_branch
      %80 = sbr.rel (0) target = $region45
    $region44: #{tpu_custom_call.1} parent=1 // pred_region
      %81 = dma.done [#allocation9], 1024
    $region45: #{tpu_custom_call.1} parent=1 // pred_fallthru
      _
    %v83 = vld [vmem:[#allocation2] sm:$0xf]
    %v84 = vld [vmem:[#allocation2 + $0x4] sm:$0xf]
    %v85 = vld [vmem:[#allocation5] sm:$0xf]
    %v86 = vld [vmem:[#allocation5 + $0x4] sm:$0xf]
    %v87 = vld [vmem:[#allocation5 + $0x8] sm:$0xf]
    %v88 = vld [vmem:[#allocation5 + $0xc] sm:$0xf]
    %v89 = vld [vmem:[#allocation5 + $0x10] sm:$0xf]
    %v90 = vld [vmem:[#allocation5 + $0x14] sm:$0xf]
    %v91 = vld [vmem:[#allocation5 + $0x18] sm:$0xf]
    %v92 = vld [vmem:[#allocation5 + $0x1c] sm:$0xf]
    %v93 = vld [vmem:[#allocation5 + $0x20] sm:$0xf]
    %v94 = vld [vmem:[#allocation5 + $0x24] sm:$0xf]
    %v95 = vld [vmem:[#allocation5 + $0x28] sm:$0xf]
    %v96 = vld [vmem:[#allocation5 + $0x2c] sm:$0xf]
    %v97 = vld [vmem:[#allocation5 + $0x30] sm:$0xf]
    %v98 = vld [vmem:[#allocation5 + $0x34] sm:$0xf]
    %v99 = vld [vmem:[#allocation5 + $0x38] sm:$0xf]
    %v100 = vld [vmem:[#allocation5 + $0x3c] sm:$0xf]
    %v101 = vld [vmem:[%s2] sm:$0x1]
    %v103 = vlaneseq
    %v104 = vshrl.u32 %v103, 7
    %v105 = vsub.s32 0, %v104
    %v106 = vrot.slane %v101, %v105
    %v110 = vunpack.c.l.b16 %v83
    %v111 = vunpack.c.l.b16 %v84
    %v112 = vpack.c.b16 %v111, %v110
    %v130 = vunpack.c.l.b16 %v85
    %v131 = vunpack.c.l.b16 %v86
    %v132 = vunpack.c.l.b16 %v87
    %v133 = vunpack.c.l.b16 %v88
    %v134 = vunpack.c.l.b16 %v89
    %v135 = vunpack.c.l.b16 %v90
    %v136 = vunpack.c.l.b16 %v91
    %v137 = vunpack.c.l.b16 %v92
    %v138 = vunpack.c.l.b16 %v93
    %v139 = vunpack.c.l.b16 %v94
    %v140 = vunpack.c.l.b16 %v95
    %v141 = vunpack.c.l.b16 %v96
    %v142 = vunpack.c.l.b16 %v97
    %v143 = vunpack.c.l.b16 %v98
    %v144 = vunpack.c.l.b16 %v99
    %v145 = vunpack.c.l.b16 %v100
    %v146 = vpack.c.b16 %v131, %v130
    %v147 = vpack.c.b16 %v133, %v132
    %v148 = vpack.c.b16 %v135, %v134
    %v149 = vpack.c.b16 %v137, %v136
    %v150 = vpack.c.b16 %v139, %v138
    %v151 = vpack.c.b16 %v141, %v140
    %v152 = vpack.c.b16 %v143, %v142
    %v153 = vpack.c.b16 %v145, %v144
    %162 = vmatprep.subr.bf16.mxu0 0
    %163 = vmatpush1.bf16.msra.mxu0 %v153
    %164 = vmatprep.subr.bf16.mxu0 0
    %165 = vmatpush1.bf16.msra.mxu0 %v152
    %166 = vmatprep.subr.bf16.mxu0 0
    %167 = vmatpush1.bf16.msra.mxu0 %v151
    %168 = vmatprep.subr.bf16.mxu0 0
    %169 = vmatpush1.bf16.msra.mxu0 %v150
    %170 = vmatprep.subr.bf16.mxu0 0
    %171 = vmatpush1.bf16.msra.mxu0 %v149
    %172 = vmatprep.subr.bf16.mxu0 0
    %173 = vmatpush1.bf16.msra.mxu0 %v148
    %174 = vmatprep.subr.bf16.mxu0 0
    %175 = vmatpush1.bf16.msra.mxu0 %v147
    %176 = vmatprep.subr.bf16.mxu0 0
    %177 = vmatpush1.bf16.msra.mxu0 %v146
    %178 = vmatprep.subr.bf16.mxu0 0
    %179 = vmatpush2.bf16.msra.mxu0 0
    %180 = vmatprep.subr.bf16.mxu0 0
    %181 = vmatpush2.bf16.msra.mxu0 0
    %182 = vmatprep.subr.bf16.mxu0 0
    %183 = vmatpush2.bf16.msra.mxu0 0
    %184 = vmatprep.subr.bf16.mxu0 0
    %185 = vmatpush2.bf16.msra.mxu0 0
    %186 = vmatprep.subr.bf16.mxu0 0
    %187 = vmatpush2.bf16.msra.mxu0 0
    %188 = vmatprep.subr.bf16.mxu0 0
    %189 = vmatpush2.bf16.msra.mxu0 0
    %190 = vmatprep.subr.bf16.mxu0 0
    %191 = vmatpush2.bf16.msra.mxu0 0
    %192 = vmatprep.subr.bf16.mxu0 0
    %193 = vmatpush2.bf16.msra.mxu0 0
    %194 = vmatprep.mubr.bf16.mxu0 0
    %195 = vmatmul.mubr.bf16.gmra.mxu0 %v112
    %v196 = vpop.f32.mrf.mxu0
    %v197 = vadd.f32 %v106, %v196
    %v198 = vpop.f32.mrf.mxu0
    %v199 = vpop.f32.mrf.mxu0
    %v200 = vadd.f32 %v106, %v199
    %v201 = vpop.f32.mrf.mxu0
    %202 = vdwg.mxu0
    %v203 = vpack.c.bf16 %v200, %v197
    %v204 = vld [vmem:[#allocation7] sm:$0xf]
    %v205 = vld [vmem:[#allocation7 + $0x4] sm:$0xf]
    %v206 = vld [vmem:[#allocation7 + $0x8] sm:$0xf]
    %v207 = vld [vmem:[#allocation7 + $0xc] sm:$0xf]
    %v208 = vld [vmem:[#allocation7 + $0x10] sm:$0xf]
    %v209 = vld [vmem:[#allocation7 + $0x14] sm:$0xf]
    %v210 = vld [vmem:[#allocation7 + $0x18] sm:$0xf]
    %v211 = vld [vmem:[#allocation7 + $0x1c] sm:$0xf]
    %v212 = vld [vmem:[#allocation7 + $0x20] sm:$0xf]
    %v213 = vld [vmem:[#allocation7 + $0x24] sm:$0xf]
    %v214 = vld [vmem:[#allocation7 + $0x28] sm:$0xf]
    %v215 = vld [vmem:[#allocation7 + $0x2c] sm:$0xf]
    %v216 = vld [vmem:[#allocation7 + $0x30] sm:$0xf]
    %v217 = vld [vmem:[#allocation7 + $0x34] sm:$0xf]
    %v218 = vld [vmem:[#allocation7 + $0x38] sm:$0xf]
    %v219 = vld [vmem:[#allocation7 + $0x3c] sm:$0xf]
    %v220 = vld [vmem:[%s4] sm:$0x1]
    %v222 = vlaneseq
    %v223 = vshrl.u32 %v222, 7
    %v224 = vsub.s32 0, %v223
    %v225 = vrot.slane %v220, %v224
    %v243 = vunpack.c.l.b16 %v204
    %v244 = vunpack.c.l.b16 %v205
    %v245 = vunpack.c.l.b16 %v206
    %v246 = vunpack.c.l.b16 %v207
    %v247 = vunpack.c.l.b16 %v208
    %v248 = vunpack.c.l.b16 %v209
    %v249 = vunpack.c.l.b16 %v210
    %v250 = vunpack.c.l.b16 %v211
    %v251 = vunpack.c.l.b16 %v212
    %v252 = vunpack.c.l.b16 %v213
    %v253 = vunpack.c.l.b16 %v214
    %v254 = vunpack.c.l.b16 %v215
    %v255 = vunpack.c.l.b16 %v216
    %v256 = vunpack.c.l.b16 %v217
    %v257 = vunpack.c.l.b16 %v218
    %v258 = vunpack.c.l.b16 %v219
    %v259 = vpack.c.b16 %v244, %v243
    %v260 = vpack.c.b16 %v246, %v245
    %v261 = vpack.c.b16 %v248, %v247
    %v262 = vpack.c.b16 %v250, %v249
    %v263 = vpack.c.b16 %v252, %v251
    %v264 = vpack.c.b16 %v254, %v253
    %v265 = vpack.c.b16 %v256, %v255
    %v266 = vpack.c.b16 %v258, %v257
    %275 = vmatprep.subr.bf16.mxu0 0
    %276 = vmatpush1.bf16.msra.mxu0 %v266
    %277 = vmatprep.subr.bf16.mxu0 0
    %278 = vmatpush1.bf16.msra.mxu0 %v265
    %279 = vmatprep.subr.bf16.mxu0 0
    %280 = vmatpush1.bf16.msra.mxu0 %v264
    %281 = vmatprep.subr.bf16.mxu0 0
    %282 = vmatpush1.bf16.msra.mxu0 %v263
    %283 = vmatprep.subr.bf16.mxu0 0
    %284 = vmatpush1.bf16.msra.mxu0 %v262
    %285 = vmatprep.subr.bf16.mxu0 0
    %286 = vmatpush1.bf16.msra.mxu0 %v261
    %287 = vmatprep.subr.bf16.mxu0 0
    %288 = vmatpush1.bf16.msra.mxu0 %v260
    %289 = vmatprep.subr.bf16.mxu0 0
    %290 = vmatpush1.bf16.msra.mxu0 %v259
    %291 = vmatprep.subr.bf16.mxu0 0
    %292 = vmatpush2.bf16.msra.mxu0 0
    %293 = vmatprep.subr.bf16.mxu0 0
    %294 = vmatpush2.bf16.msra.mxu0 0
    %295 = vmatprep.subr.bf16.mxu0 0
    %296 = vmatpush2.bf16.msra.mxu0 0
    %297 = vmatprep.subr.bf16.mxu0 0
    %298 = vmatpush2.bf16.msra.mxu0 0
    %299 = vmatprep.subr.bf16.mxu0 0
    %300 = vmatpush2.bf16.msra.mxu0 0
    %301 = vmatprep.subr.bf16.mxu0 0
    %302 = vmatpush2.bf16.msra.mxu0 0
    %303 = vmatprep.subr.bf16.mxu0 0
    %304 = vmatpush2.bf16.msra.mxu0 0
    %305 = vmatprep.subr.bf16.mxu0 0
    %306 = vmatpush2.bf16.msra.mxu0 0
    %307 = vmatprep.mubr.bf16.mxu0 0
    %308 = vmatmul.mubr.bf16.gmra.mxu0 %v203
    %v309 = vpop.f32.mrf.mxu0
    %v310 = vadd.f32 %v225, %v309
    %v311 = vpop.f32.mrf.mxu0
    %v312 = vpop.f32.mrf.mxu0
    %v313 = vadd.f32 %v225, %v312
    %v314 = vpop.f32.mrf.mxu0
    %315 = vdwg.mxu0
    %v316 = vtanh.pop %v310
    %v317 = vtanh.pop %v313
    %v318 = vpack.c.bf16 %v317, %v316
    %v319 = vld [vmem:[#allocation8] sm:$0xf]
    %v320 = vld [vmem:[#allocation8 + $0x4] sm:$0xf]
    %v321 = vld [vmem:[#allocation8 + $0x8] sm:$0xf]
    %v322 = vld [vmem:[#allocation8 + $0xc] sm:$0xf]
    %v323 = vld [vmem:[#allocation8 + $0x10] sm:$0xf]
    %v324 = vld [vmem:[#allocation8 + $0x14] sm:$0xf]
    %v325 = vld [vmem:[#allocation8 + $0x18] sm:$0xf]
    %v326 = vld [vmem:[#allocation8 + $0x1c] sm:$0xf]
    %v327 = vld [vmem:[#allocation8 + $0x20] sm:$0xf]
    %v328 = vld [vmem:[#allocation8 + $0x24] sm:$0xf]
    %v329 = vld [vmem:[#allocation8 + $0x28] sm:$0xf]
    %v330 = vld [vmem:[#allocation8 + $0x2c] sm:$0xf]
    %v331 = vld [vmem:[#allocation8 + $0x30] sm:$0xf]
    %v332 = vld [vmem:[#allocation8 + $0x34] sm:$0xf]
    %v333 = vld [vmem:[#allocation8 + $0x38] sm:$0xf]
    %v334 = vld [vmem:[#allocation8 + $0x3c] sm:$0xf]
    %v335 = vld [vmem:[%s6] sm:$0x1]
    %v337 = vlaneseq
    %v338 = vshrl.u32 %v337, 7
    %v339 = vsub.s32 0, %v338
    %v340 = vrot.slane %v335, %v339
    %v358 = vunpack.c.l.b16 %v319
    %v359 = vunpack.c.l.b16 %v320
    %v360 = vunpack.c.l.b16 %v321
    %v361 = vunpack.c.l.b16 %v322
    %v362 = vunpack.c.l.b16 %v323
    %v363 = vunpack.c.l.b16 %v324
    %v364 = vunpack.c.l.b16 %v325
    %v365 = vunpack.c.l.b16 %v326
    %v366 = vunpack.c.l.b16 %v327
    %v367 = vunpack.c.l.b16 %v328
    %v368 = vunpack.c.l.b16 %v329
    %v369 = vunpack.c.l.b16 %v330
    %v370 = vunpack.c.l.b16 %v331
    %v371 = vunpack.c.l.b16 %v332
    %v372 = vunpack.c.l.b16 %v333
    %v373 = vunpack.c.l.b16 %v334
    %v374 = vpack.c.b16 %v359, %v358
    %v375 = vpack.c.b16 %v361, %v360
    %v376 = vpack.c.b16 %v363, %v362
    %v377 = vpack.c.b16 %v365, %v364
    %v378 = vpack.c.b16 %v367, %v366
    %v379 = vpack.c.b16 %v369, %v368
    %v380 = vpack.c.b16 %v371, %v370
    %v381 = vpack.c.b16 %v373, %v372
    %390 = vmatprep.subr.bf16.mxu0 0
    %391 = vmatpush1.bf16.msra.mxu0 %v381
    %392 = vmatprep.subr.bf16.mxu0 0
    %393 = vmatpush1.bf16.msra.mxu0 %v380
    %394 = vmatprep.subr.bf16.mxu0 0
    %395 = vmatpush1.bf16.msra.mxu0 %v379
    %396 = vmatprep.subr.bf16.mxu0 0
    %397 = vmatpush1.bf16.msra.mxu0 %v378
    %398 = vmatprep.subr.bf16.mxu0 0
    %399 = vmatpush1.bf16.msra.mxu0 %v377
    %400 = vmatprep.subr.bf16.mxu0 0
    %401 = vmatpush1.bf16.msra.mxu0 %v376
    %402 = vmatprep.subr.bf16.mxu0 0
    %403 = vmatpush1.bf16.msra.mxu0 %v375
    %404 = vmatprep.subr.bf16.mxu0 0
    %405 = vmatpush1.bf16.msra.mxu0 %v374
    %406 = vmatprep.subr.bf16.mxu0 0
    %407 = vmatpush2.bf16.msra.mxu0 0
    %408 = vmatprep.subr.bf16.mxu0 0
    %409 = vmatpush2.bf16.msra.mxu0 0
    %410 = vmatprep.subr.bf16.mxu0 0
    %411 = vmatpush2.bf16.msra.mxu0 0
    %412 = vmatprep.subr.bf16.mxu0 0
    %413 = vmatpush2.bf16.msra.mxu0 0
    %414 = vmatprep.subr.bf16.mxu0 0
    %415 = vmatpush2.bf16.msra.mxu0 0
    %416 = vmatprep.subr.bf16.mxu0 0
    %417 = vmatpush2.bf16.msra.mxu0 0
    %418 = vmatprep.subr.bf16.mxu0 0
    %419 = vmatpush2.bf16.msra.mxu0 0
    %420 = vmatprep.subr.bf16.mxu0 0
    %421 = vmatpush2.bf16.msra.mxu0 0
    %422 = vmatprep.mubr.bf16.mxu0 0
    %423 = vmatmul.mubr.bf16.gmra.mxu0 %v318
    %v424 = vpop.f32.mrf.mxu0
    %v425 = vadd.f32 %v340, %v424
    %v426 = vpop.f32.mrf.mxu0
    %v427 = vpop.f32.mrf.mxu0
    %v428 = vadd.f32 %v340, %v427
    %v429 = vpop.f32.mrf.mxu0
    %430 = vdwg.mxu0
    %431 = vst [vmem:[#allocation10] sm:$0xff] %v425
    %432 = vst [vmem:[#allocation10 + $0x8] sm:$0xff] %v428
    // Predicated region
    $region46: #{tpu_custom_call.1} parent=1 // pred_check
      _
    $region47: #{tpu_custom_call.1} parent=1 // pred_check_branch
      %434 = sbr.rel (0) target = $region49
    $region48: #{tpu_custom_call.1} parent=1 // pred_region
      %s436 = ssub.s32 256, 256
      %437 = vsyncadd [#allocation4], %s436
      %s438 = sshll.u32 [#allocation10], 4
      %s439 = int_to_ptr.vmem [resolvable:$true] %s438
      %444 = dma.vmem_to_hbm [thread:$0]  %s439, 256, %s7, [#allocation4], 128, 128, 8
    $region49: #{tpu_custom_call.1} parent=1 // pred_fallthru
      _
    // Predicated region
    $region50: #{tpu_custom_call.1} parent=1 // pred_check
      _
    $region51: #{tpu_custom_call.1} parent=1 // pred_check_branch
      %446 = sbr.rel (0) target = $region53
    $region52: #{tpu_custom_call.1} parent=1 // pred_region
      %447 = dma.done [#allocation4], 256
    $region53: #{tpu_custom_call.1} parent=1 // pred_fallthru
      _
    %448 = vsyncpa [#allocation3], 1
    %449 = vsyncpa [#allocation6], 1
    %450 = vsyncpa [#allocation9], 1
    %451 = vsyncpa [#allocation4], 1

// kernel: tpu_custom_call.1
$region0: #{tpu_custom_call.1}
  #allocation0 [shape = 'u32[]', space=smem, size = 0x4, offset = 0x4, fixed_abs, tag = 'smem constant byte address 0x4 - core index']
  #allocation1 [shape = 'u32[144,128]{1,0:T(1,128)}', space=vmem, size = 0x12000, scoped, tag = 'internal scratch']
  %s0 = inlined_call_operand.hbm [shape: bf16[16,128], index: 0, kind: input, shape index: {}]
  %s1 = inlined_call_operand.hbm [shape: bf16[128,128], index: 1, kind: input, shape index: {}]
  %s2 = inlined_call_operand.vmem [shape: f32[1,128], index: 2, kind: input, shape index: {}]
  %s3 = inlined_call_operand.hbm [shape: bf16[128,128], index: 3, kind: input, shape index: {}]
  %s4 = inlined_call_operand.vmem [shape: f32[1,128], index: 4, kind: input, shape index: {}]
  %s5 = inlined_call_operand.hbm [shape: bf16[128,128], index: 5, kind: input, shape index: {}]
  %s6 = inlined_call_operand.vmem [shape: f32[1,128], index: 6, kind: input, shape index: {}]
  %s7 = inlined_call_operand.hbm [shape: f32[16,128], index: 7, kind: output, shape index: {}]
  %s8 = sld [smem:[#allocation0]]
  $region54: #{tpu_custom_call.1} parent=0
    _
  %s10 = ssub.s32 1, %s8
  %s11 = scalar_select 0, %s10, %s8
  $region1: #{tpu_custom_call.1} parent=0
    #allocation2 [shape = 'u8[4096]{0}', space=vmem, size = 0x1000, scoped, tag = 'input window, operand 0, single buffered']
    #allocation3 [shape = 's32[1]{0}', space=sflag, size = 0x4, scoped, tag = 'scoped memory for tpu_custom_call.1']
    #allocation4 [shape = 's32[1]{0}', space=sflag, size = 0x4, scoped, tag = 'scoped memory for tpu_custom_call.1']
    #allocation5 [shape = 'u8[32768]{0}', space=vmem, size = 0x8000, scoped, tag = 'input window, operand 1, single buffered']
    #allocation6 [shape = 's32[1]{0}', space=sflag, size = 0x4, scoped, tag = 'scoped memory for tpu_custom_call.1']
    #allocation7 [shape = 'u8[32768]{0}', space=vmem, size = 0x8000, scoped, tag = 'input window, operand 3, single buffered']
    #allocation8 [shape = 'u8[32768]{0}', space=vmem, size = 0x8000, scoped, tag = 'input window, operand 5, single buffered']
    #allocation9 [shape = 's32[1]{0}', space=sflag, size = 0x4, scoped, tag = 'scoped memory for tpu_custom_call.1']
    #allocation10 [shape = 'u8[8192]{0}', space=vmem, size = 0x2000, scoped, tag = 'output window, operand 0, single buffered']
    %12 = vsyncpa [#allocation3], 0
    %13 = vsyncpa [#allocation6], 0
    %14 = vsyncpa [#allocation9], 0
    %15 = vsyncpa [#allocation4], 0
    // Predicated region
    $region2: #{tpu_custom_call.1} parent=1 // pred_check
      _
    $region3: #{tpu_custom_call.1} parent=1 // pred_check_branch
      %17 = sbr.rel (0) target = $region5
    $region4: #{tpu_custom_call.1} parent=1 // pred_region
      %s19 = ssub.s32 128, 128
      %20 = vsyncadd [#allocation3], %s19
      %s21 = sshll.u32 [#allocation2], 4
      %s22 = int_to_ptr.vmem [resolvable:$true] %s21
      %27 = dma.hbm_to_vmem [thread:$0]  %s0, 128, %s22, [#allocation3], 64, 64, 4
    $region5: #{tpu_custom_call.1} parent=1 // pred_fallthru
      _
    // Predicated region
    $region6: #{tpu_custom_call.1} parent=1 // pred_check
      _
    $region7: #{tpu_custom_call.1} parent=1 // pred_check_branch
      %29 = sbr.rel (0) target = $region9
    $region8: #{tpu_custom_call.1} parent=1 // pred_region
      %s31 = ssub.s32 1024, 1024
      %32 = vsyncadd [#allocation6], %s31
      %s33 = sshll.u32 [#allocation5], 4
      %s34 = int_to_ptr.vmem [resolvable:$true] %s33
      %39 = dma.hbm_to_vmem [thread:$0]  %s1, 1024, %s34, [#allocation6], 64, 64, 4
    $region9: #{tpu_custom_call.1} parent=1 // pred_fallthru
      _
    // Predicated region
    $region10: #{tpu_custom_call.1} parent=1 // pred_check
      _
    $region11: #{tpu_custom_call.1} parent=1 // pred_check_branch
      %41 = sbr.rel (0) target = $region13
    $region12: #{tpu_custom_call.1} parent=1 // pred_region
      _
    $region13: #{tpu_custom_call.1} parent=1 // pred_fallthru
      _
    // Predicated region
    $region14: #{tpu_custom_call.1} parent=1 // pred_check
      _
    $region15: #{tpu_custom_call.1} parent=1 // pred_check_branch
      %43 = sbr.rel (0) target = $region17
    $region16: #{tpu_custom_call.1} parent=1 // pred_region
      %s45 = ssub.s32 1024, 1024
      %46 = vsyncadd [#allocation6], %s45
      %s47 = sshll.u32 [#allocation7], 4
      %s48 = int_to_ptr.vmem [resolvable:$true] %s47
      %53 = dma.hbm_to_vmem [thread:$0]  %s3, 1024, %s48, [#allocation6], 64, 64, 4
    $region17: #{tpu_custom_call.1} parent=1 // pred_fallthru
      _
    // Predicated region
    $region18: #{tpu_custom_call.1} parent=1 // pred_check
      _
    $region19: #{tpu_custom_call.1} parent=1 // pred_check_branch
      %55 = sbr.rel (0) target = $region21
    $region20: #{tpu_custom_call.1} parent=1 // pred_region
      _
    $region21: #{tpu_custom_call.1} parent=1 // pred_fallthru
      _
    // Predicated region
    $region22: #{tpu_custom_call.1} parent=1 // pred_check
      _
    $region23: #{tpu_custom_call.1} parent=1 // pred_check_branch
      %57 = sbr.rel (0) target = $region25
    $region24: #{tpu_custom_call.1} parent=1 // pred_region
      %s59 = ssub.s32 1024, 1024
      %60 = vsyncadd [#allocation9], %s59
      %s61 = sshll.u32 [#allocation8], 4
      %s62 = int_to_ptr.vmem [resolvable:$true] %s61
      %67 = dma.hbm_to_vmem [thread:$0]  %s5, 1024, %s62, [#allocation9], 64, 64, 4
    $region25: #{tpu_custom_call.1} parent=1 // pred_fallthru
      _
    // Predicated region
    $region26: #{tpu_custom_call.1} parent=1 // pred_check
      _
    $region27: #{tpu_custom_call.1} parent=1 // pred_check_branch
      %69 = sbr.rel (0) target = $region29
    $region28: #{tpu_custom_call.1} parent=1 // pred_region
      _
    $region29: #{tpu_custom_call.1} parent=1 // pred_fallthru
      _
    // Predicated region
    $region30: #{tpu_custom_call.1} parent=1 // pred_check
      _
    $region31: #{tpu_custom_call.1} parent=1 // pred_check_branch
      %71 = sbr.rel (0) target = $region33
    $region32: #{tpu_custom_call.1} parent=1 // pred_region
      %72 = dma.done [#allocation3], 128
    $region33: #{tpu_custom_call.1} parent=1 // pred_fallthru
      _
    // Predicated region
    $region34: #{tpu_custom_call.1} parent=1 // pred_check
      _
    $region35: #{tpu_custom_call.1} parent=1 // pred_check_branch
      %74 = sbr.rel (0) target = $region37
    $region36: #{tpu_custom_call.1} parent=1 // pred_region
      %75 = dma.done [#allocation6], 1024
    $region37: #{tpu_custom_call.1} parent=1 // pred_fallthru
      _
    // Predicated region
    $region38: #{tpu_custom_call.1} parent=1 // pred_check
      _
    $region39: #{tpu_custom_call.1} parent=1 // pred_check_branch
      %77 = sbr.rel (0) target = $region41
    $region40: #{tpu_custom_call.1} parent=1 // pred_region
      %78 = dma.done [#allocation6], 1024
    $region41: #{tpu_custom_call.1} parent=1 // pred_fallthru
      _
    // Predicated region
    $region42: #{tpu_custom_call.1} parent=1 // pred_check
      _
    $region43: #{tpu_custom_call.1} parent=1 // pred_check_branch
      %80 = sbr.rel (0) target = $region45
    $region44: #{tpu_custom_call.1} parent=1 // pred_region
      %81 = dma.done [#allocation9], 1024
    $region45: #{tpu_custom_call.1} parent=1 // pred_fallthru
      _
    %v83 = vld [vmem:[#allocation2] sm:$0xf]
    %v84 = vld [vmem:[#allocation2 + $0x4] sm:$0xf]
    %v85 = vld [vmem:[#allocation5] sm:$0xf]
    %v86 = vld [vmem:[#allocation5 + $0x4] sm:$0xf]
    %v87 = vld [vmem:[#allocation5 + $0x8] sm:$0xf]
    %v88 = vld [vmem:[#allocation5 + $0xc] sm:$0xf]
    %v89 = vld [vmem:[#allocation5 + $0x10] sm:$0xf]
    %v90 = vld [vmem:[#allocation5 + $0x14] sm:$0xf]
    %v91 = vld [vmem:[#allocation5 + $0x18] sm:$0xf]
    %v92 = vld [vmem:[#allocation5 + $0x1c] sm:$0xf]
    %v93 = vld [vmem:[#allocation5 + $0x20] sm:$0xf]
    %v94 = vld [vmem:[#allocation5 + $0x24] sm:$0xf]
    %v95 = vld [vmem:[#allocation5 + $0x28] sm:$0xf]
    %v96 = vld [vmem:[#allocation5 + $0x2c] sm:$0xf]
    %v97 = vld [vmem:[#allocation5 + $0x30] sm:$0xf]
    %v98 = vld [vmem:[#allocation5 + $0x34] sm:$0xf]
    %v99 = vld [vmem:[#allocation5 + $0x38] sm:$0xf]
    %v100 = vld [vmem:[#allocation5 + $0x3c] sm:$0xf]
    %v101 = vld [vmem:[%s2] sm:$0x1]
    %v103 = vlaneseq
    %v104 = vshrl.u32 %v103, 7
    %v105 = vsub.s32 0, %v104
    %v106 = vrot.slane %v101, %v105
    %v110 = vunpack.c.l.b16 %v83
    %v111 = vunpack.c.l.b16 %v84
    %v112 = vpack.c.b16 %v111, %v110
    %v130 = vunpack.c.l.b16 %v85
    %v131 = vunpack.c.l.b16 %v86
    %v132 = vunpack.c.l.b16 %v87
    %v133 = vunpack.c.l.b16 %v88
    %v134 = vunpack.c.l.b16 %v89
    %v135 = vunpack.c.l.b16 %v90
    %v136 = vunpack.c.l.b16 %v91
    %v137 = vunpack.c.l.b16 %v92
    %v138 = vunpack.c.l.b16 %v93
    %v139 = vunpack.c.l.b16 %v94
    %v140 = vunpack.c.l.b16 %v95
    %v141 = vunpack.c.l.b16 %v96
    %v142 = vunpack.c.l.b16 %v97
    %v143 = vunpack.c.l.b16 %v98
    %v144 = vunpack.c.l.b16 %v99
    %v145 = vunpack.c.l.b16 %v100
    %v146 = vpack.c.b16 %v131, %v130
    %v147 = vpack.c.b16 %v133, %v132
    %v148 = vpack.c.b16 %v135, %v134
    %v149 = vpack.c.b16 %v137, %v136
    %v150 = vpack.c.b16 %v139, %v138
    %v151 = vpack.c.b16 %v141, %v140
    %v152 = vpack.c.b16 %v143, %v142
    %v153 = vpack.c.b16 %v145, %v144
    %162 = vmatprep.subr.bf16.mxu0 0
    %163 = vmatpush1.bf16.msra.mxu0 %v153
    %164 = vmatprep.subr.bf16.mxu0 0
    %165 = vmatpush1.bf16.msra.mxu0 %v152
    %166 = vmatprep.subr.bf16.mxu0 0
    %167 = vmatpush1.bf16.msra.mxu0 %v151
    %168 = vmatprep.subr.bf16.mxu0 0
    %169 = vmatpush1.bf16.msra.mxu0 %v150
    %170 = vmatprep.subr.bf16.mxu0 0
    %171 = vmatpush1.bf16.msra.mxu0 %v149
    %172 = vmatprep.subr.bf16.mxu0 0
    %173 = vmatpush1.bf16.msra.mxu0 %v148
    %174 = vmatprep.subr.bf16.mxu0 0
    %175 = vmatpush1.bf16.msra.mxu0 %v147
    %176 = vmatprep.subr.bf16.mxu0 0
    %177 = vmatpush1.bf16.msra.mxu0 %v146
    %178 = vmatprep.subr.bf16.mxu0 0
    %179 = vmatpush2.bf16.msra.mxu0 0
    %180 = vmatprep.subr.bf16.mxu0 0
    %181 = vmatpush2.bf16.msra.mxu0 0
    %182 = vmatprep.subr.bf16.mxu0 0
    %183 = vmatpush2.bf16.msra.mxu0 0
    %184 = vmatprep.subr.bf16.mxu0 0
    %185 = vmatpush2.bf16.msra.mxu0 0
    %186 = vmatprep.subr.bf16.mxu0 0
    %187 = vmatpush2.bf16.msra.mxu0 0
    %188 = vmatprep.subr.bf16.mxu0 0
    %189 = vmatpush2.bf16.msra.mxu0 0
    %190 = vmatprep.subr.bf16.mxu0 0
    %191 = vmatpush2.bf16.msra.mxu0 0
    %192 = vmatprep.subr.bf16.mxu0 0
    %193 = vmatpush2.bf16.msra.mxu0 0
    %194 = vmatprep.mubr.bf16.mxu0 0
    %195 = vmatmul.mubr.bf16.gmra.mxu0 %v112
    %v196 = vpop.f32.mrf.mxu0
    %v197 = vadd.f32 %v106, %v196
    %v198 = vpop.f32.mrf.mxu0
    %v199 = vpop.f32.mrf.mxu0
    %v200 = vadd.f32 %v106, %v199
    %v201 = vpop.f32.mrf.mxu0
    %202 = vdwg.mxu0
    %v203 = vpack.c.bf16 %v200, %v197
    %v204 = vld [vmem:[#allocation7] sm:$0xf]
    %v205 = vld [vmem:[#allocation7 + $0x4] sm:$0xf]
    %v206 = vld [vmem:[#allocation7 + $0x8] sm:$0xf]
    %v207 = vld [vmem:[#allocation7 + $0xc] sm:$0xf]
    %v208 = vld [vmem:[#allocation7 + $0x10] sm:$0xf]
    %v209 = vld [vmem:[#allocation7 + $0x14] sm:$0xf]
    %v210 = vld [vmem:[#allocation7 + $0x18] sm:$0xf]
    %v211 = vld [vmem:[#allocation7 + $0x1c] sm:$0xf]
    %v212 = vld [vmem:[#allocation7 + $0x20] sm:$0xf]
    %v213 = vld [vmem:[#allocation7 + $0x24] sm:$0xf]
    %v214 = vld [vmem:[#allocation7 + $0x28] sm:$0xf]
    %v215 = vld [vmem:[#allocation7 + $0x2c] sm:$0xf]
    %v216 = vld [vmem:[#allocation7 + $0x30] sm:$0xf]
    %v217 = vld [vmem:[#allocation7 + $0x34] sm:$0xf]
    %v218 = vld [vmem:[#allocation7 + $0x38] sm:$0xf]
    %v219 = vld [vmem:[#allocation7 + $0x3c] sm:$0xf]
    %v220 = vld [vmem:[%s4] sm:$0x1]
    %v222 = vlaneseq
    %v223 = vshrl.u32 %v222, 7
    %v224 = vsub.s32 0, %v223
    %v225 = vrot.slane %v220, %v224
    %v243 = vunpack.c.l.b16 %v204
    %v244 = vunpack.c.l.b16 %v205
    %v245 = vunpack.c.l.b16 %v206
    %v246 = vunpack.c.l.b16 %v207
    %v247 = vunpack.c.l.b16 %v208
    %v248 = vunpack.c.l.b16 %v209
    %v249 = vunpack.c.l.b16 %v210
    %v250 = vunpack.c.l.b16 %v211
    %v251 = vunpack.c.l.b16 %v212
    %v252 = vunpack.c.l.b16 %v213
    %v253 = vunpack.c.l.b16 %v214
    %v254 = vunpack.c.l.b16 %v215
    %v255 = vunpack.c.l.b16 %v216
    %v256 = vunpack.c.l.b16 %v217
    %v257 = vunpack.c.l.b16 %v218
    %v258 = vunpack.c.l.b16 %v219
    %v259 = vpack.c.b16 %v244, %v243
    %v260 = vpack.c.b16 %v246, %v245
    %v261 = vpack.c.b16 %v248, %v247
    %v262 = vpack.c.b16 %v250, %v249
    %v263 = vpack.c.b16 %v252, %v251
    %v264 = vpack.c.b16 %v254, %v253
    %v265 = vpack.c.b16 %v256, %v255
    %v266 = vpack.c.b16 %v258, %v257
    %275 = vmatprep.subr.bf16.mxu0 0
    %276 = vmatpush1.bf16.msra.mxu0 %v266
    %277 = vmatprep.subr.bf16.mxu0 0
    %278 = vmatpush1.bf16.msra.mxu0 %v265
    %279 = vmatprep.subr.bf16.mxu0 0
    %280 = vmatpush1.bf16.msra.mxu0 %v264
    %281 = vmatprep.subr.bf16.mxu0 0
    %282 = vmatpush1.bf16.msra.mxu0 %v263
    %283 = vmatprep.subr.bf16.mxu0 0
    %284 = vmatpush1.bf16.msra.mxu0 %v262
    %285 = vmatprep.subr.bf16.mxu0 0
    %286 = vmatpush1.bf16.msra.mxu0 %v261
    %287 = vmatprep.subr.bf16.mxu0 0
    %288 = vmatpush1.bf16.msra.mxu0 %v260
    %289 = vmatprep.subr.bf16.mxu0 0
    %290 = vmatpush1.bf16.msra.mxu0 %v259
    %291 = vmatprep.subr.bf16.mxu0 0
    %292 = vmatpush2.bf16.msra.mxu0 0
    %293 = vmatprep.subr.bf16.mxu0 0
    %294 = vmatpush2.bf16.msra.mxu0 0
    %295 = vmatprep.subr.bf16.mxu0 0
    %296 = vmatpush2.bf16.msra.mxu0 0
    %297 = vmatprep.subr.bf16.mxu0 0
    %298 = vmatpush2.bf16.msra.mxu0 0
    %299 = vmatprep.subr.bf16.mxu0 0
    %300 = vmatpush2.bf16.msra.mxu0 0
    %301 = vmatprep.subr.bf16.mxu0 0
    %302 = vmatpush2.bf16.msra.mxu0 0
    %303 = vmatprep.subr.bf16.mxu0 0
    %304 = vmatpush2.bf16.msra.mxu0 0
    %305 = vmatprep.subr.bf16.mxu0 0
    %306 = vmatpush2.bf16.msra.mxu0 0
    %307 = vmatprep.mubr.bf16.mxu0 0
    %308 = vmatmul.mubr.bf16.gmra.mxu0 %v203
    %v309 = vpop.f32.mrf.mxu0
    %v310 = vadd.f32 %v225, %v309
    %v311 = vpop.f32.mrf.mxu0
    %v312 = vpop.f32.mrf.mxu0
    %v313 = vadd.f32 %v225, %v312
    %v314 = vpop.f32.mrf.mxu0
    %315 = vdwg.mxu0
    %v316 = vtanh.pop %v310
    %v317 = vtanh.pop %v313
    %v318 = vpack.c.bf16 %v317, %v316
    %v319 = vld [vmem:[#allocation8] sm:$0xf]
    %v320 = vld [vmem:[#allocation8 + $0x4] sm:$0xf]
    %v321 = vld [vmem:[#allocation8 + $0x8] sm:$0xf]
    %v322 = vld [vmem:[#allocation8 + $0xc] sm:$0xf]
    %v323 = vld [vmem:[#allocation8 + $0x10] sm:$0xf]
    %v324 = vld [vmem:[#allocation8 + $0x14] sm:$0xf]
    %v325 = vld [vmem:[#allocation8 + $0x18] sm:$0xf]
    %v326 = vld [vmem:[#allocation8 + $0x1c] sm:$0xf]
    %v327 = vld [vmem:[#allocation8 + $0x20] sm:$0xf]
    %v328 = vld [vmem:[#allocation8 + $0x24] sm:$0xf]
    %v329 = vld [vmem:[#allocation8 + $0x28] sm:$0xf]
    %v330 = vld [vmem:[#allocation8 + $0x2c] sm:$0xf]
    %v331 = vld [vmem:[#allocation8 + $0x30] sm:$0xf]
    %v332 = vld [vmem:[#allocation8 + $0x34] sm:$0xf]
    %v333 = vld [vmem:[#allocation8 + $0x38] sm:$0xf]
    %v334 = vld [vmem:[#allocation8 + $0x3c] sm:$0xf]
    %v335 = vld [vmem:[%s6] sm:$0x1]
    %v337 = vlaneseq
    %v338 = vshrl.u32 %v337, 7
    %v339 = vsub.s32 0, %v338
    %v340 = vrot.slane %v335, %v339
    %v358 = vunpack.c.l.b16 %v319
    %v359 = vunpack.c.l.b16 %v320
    %v360 = vunpack.c.l.b16 %v321
    %v361 = vunpack.c.l.b16 %v322
    %v362 = vunpack.c.l.b16 %v323
    %v363 = vunpack.c.l.b16 %v324
    %v364 = vunpack.c.l.b16 %v325
    %v365 = vunpack.c.l.b16 %v326
    %v366 = vunpack.c.l.b16 %v327
    %v367 = vunpack.c.l.b16 %v328
    %v368 = vunpack.c.l.b16 %v329
    %v369 = vunpack.c.l.b16 %v330
    %v370 = vunpack.c.l.b16 %v331
    %v371 = vunpack.c.l.b16 %v332
    %v372 = vunpack.c.l.b16 %v333
    %v373 = vunpack.c.l.b16 %v334
    %v374 = vpack.c.b16 %v359, %v358
    %v375 = vpack.c.b16 %v361, %v360
    %v376 = vpack.c.b16 %v363, %v362
    %v377 = vpack.c.b16 %v365, %v364
    %v378 = vpack.c.b16 %v367, %v366
    %v379 = vpack.c.b16 %v369, %v368
    %v380 = vpack.c.b16 %v371, %v370
    %v381 = vpack.c.b16 %v373, %v372
    %390 = vmatprep.subr.bf16.mxu0 0
    %391 = vmatpush1.bf16.msra.mxu0 %v381
    %392 = vmatprep.subr.bf16.mxu0 0
    %393 = vmatpush1.bf16.msra.mxu0 %v380
    %394 = vmatprep.subr.bf16.mxu0 0
    %395 = vmatpush1.bf16.msra.mxu0 %v379
    %396 = vmatprep.subr.bf16.mxu0 0
    %397 = vmatpush1.bf16.msra.mxu0 %v378
    %398 = vmatprep.subr.bf16.mxu0 0
    %399 = vmatpush1.bf16.msra.mxu0 %v377
    %400 = vmatprep.subr.bf16.mxu0 0
    %401 = vmatpush1.bf16.msra.mxu0 %v376
    %402 = vmatprep.subr.bf16.mxu0 0
    %403 = vmatpush1.bf16.msra.mxu0 %v375
    %404 = vmatprep.subr.bf16.mxu0 0
    %405 = vmatpush1.bf16.msra.mxu0 %v374
    %406 = vmatprep.subr.bf16.mxu0 0
    %407 = vmatpush2.bf16.msra.mxu0 0
    %408 = vmatprep.subr.bf16.mxu0 0
    %409 = vmatpush2.bf16.msra.mxu0 0
    %410 = vmatprep.subr.bf16.mxu0 0
    %411 = vmatpush2.bf16.msra.mxu0 0
    %412 = vmatprep.subr.bf16.mxu0 0
    %413 = vmatpush2.bf16.msra.mxu0 0
    %414 = vmatprep.subr.bf16.mxu0 0
    %415 = vmatpush2.bf16.msra.mxu0 0
    %416 = vmatprep.subr.bf16.mxu0 0
    %417 = vmatpush2.bf16.msra.mxu0 0
    %418 = vmatprep.subr.bf16.mxu0 0
    %419 = vmatpush2.bf16.msra.mxu0 0
    %420 = vmatprep.subr.bf16.mxu0 0
    %421 = vmatpush2.bf16.msra.mxu0 0
    %422 = vmatprep.mubr.bf16.mxu0 0
    %423 = vmatmul.mubr.bf16.gmra.mxu0 %v318
    %v424 = vpop.f32.mrf.mxu0
    %v425 = vadd.f32 %v340, %v424
    %v426 = vpop.f32.mrf.mxu0
    %v427 = vpop.f32.mrf.mxu0
    %v428 = vadd.f32 %v340, %v427
    %v429 = vpop.f32.mrf.mxu0
    %430 = vdwg.mxu0
    %431 = vst [vmem:[#allocation10] sm:$0xff] %v425
    %432 = vst [vmem:[#allocation10 + $0x8] sm:$0xff] %v428
    // Predicated region
    $region46: #{tpu_custom_call.1} parent=1 // pred_check
      _
    $region47: #{tpu_custom_call.1} parent=1 // pred_check_branch
      %434 = sbr.rel (0) target = $region49
    $region48: #{tpu_custom_call.1} parent=1 // pred_region
      %s436 = ssub.s32 256, 256
      %437 = vsyncadd [#allocation4], %s436
      %s438 = sshll.u32 [#allocation10], 4
      %s439 = int_to_ptr.vmem [resolvable:$true] %s438
      %444 = dma.vmem_to_hbm [thread:$0]  %s439, 256, %s7, [#allocation4], 128, 128, 8
    $region49: #{tpu_custom_call.1} parent=1 // pred_fallthru
      _
    // Predicated region
    $region50: #{tpu_custom_call.1} parent=1 // pred_check
      _
    $region51: #{tpu_custom_call.1} parent=1 // pred_check_branch
      %446 = sbr.rel (0) target = $region53
    $region52: #{tpu_custom_call.1} parent=1 // pred_region
      %447 = dma.done [#allocation4], 256
    $region53: #{tpu_custom_call.1} parent=1 // pred_fallthru
      _
    %448 = vsyncpa [#allocation3], 1
    %449 = vsyncpa [#allocation6], 1
    %450 = vsyncpa [#allocation9], 1
    %451 = vsyncpa [#allocation4], 1

</llo_original>
